<compile_context>
chip_gen: v5e
topology: v5e:2x2
jax: 0.10.0
libtpu: 0.0.40
codegen_flags: <defaults>
</compile_context>

<pallas_src>
import functools

import numpy as np

import jax
import jax.numpy as jnp
from jax.experimental import pallas as pl
from jax.experimental.pallas import tpu as pltpu


# --------------------------------------------------------------------------------------
# Shared helpers (used by both the Pallas wrapper and the NumPy reference)
# --------------------------------------------------------------------------------------
def _grid_constants(xyz_range, pillar_wh):
    min_xy = np.array([xyz_range[0][0], xyz_range[1][0]], np.float32)
    max_xy = np.array([xyz_range[0][1], xyz_range[1][1]], np.float32)
    wh = np.array(pillar_wh, np.float32)
    num_xy = np.ceil((max_xy - min_xy) / wh)  # float32, e.g. [640., 640.]
    return min_xy, wh, num_xy


def compute_pillar_index(point_clouds, xyz_range, pillar_wh):
    """Per-point pillar index, matching the PyTorch float32 math.

    Returns ((N, P) int32 pillar indexes, num_x_grids as python int)."""
    min_xy, wh, num_xy = _grid_constants(xyz_range, pillar_wh)
    num_x = int(num_xy[0])
    pts = jnp.asarray(point_clouds, jnp.float32)
    ij = jnp.floor((pts[..., :2] - jnp.asarray(min_xy)) / jnp.asarray(wh))
    ij = jnp.minimum(ij, jnp.asarray(num_xy) - 1.0).astype(jnp.int32)
    pidx = ij[..., 1] * num_x + ij[..., 0]
    return pidx.astype(jnp.int32), num_x


def _round_up(x, m):
    return (x + m - 1) // m * m


# --------------------------------------------------------------------------------------
# Pallas kernel: dense per-pillar feature augmentation (pure elementwise, lane = pillars)
# --------------------------------------------------------------------------------------
def pillar_feature_kernel(pts_ref, meta_ref, out_ref, *, pad_value):
    """One (batch, pillar-tile) grid step.

    pts_ref  : (1, 4, max_points, TP)  x/y/z/r planes, pillars on the lane dim (TP % 128 == 0)
    meta_ref : (1, 6, TP)              [count, mean_x, mean_y, mean_z, center_x, center_y]
    out_ref  : (1, 9, max_points, TP)  9 output feature planes
    """
    x = pts_ref[0, 0]                 # (max_points, TP)
    y = pts_ref[0, 1]
    z = pts_ref[0, 2]
    r = pts_ref[0, 3]

    cnt = meta_ref[0, 0:1, :]         # (1, TP)
    mean_x = meta_ref[0, 1:2, :]
    mean_y = meta_ref[0, 2:3, :]
    mean_z = meta_ref[0, 3:4, :]
    cx = meta_ref[0, 4:5, :]
    cy = meta_ref[0, 5:6, :]

    npts, tp = x.shape
    # Occupancy: point slot p of a pillar is filled iff p < count (slab is filled from rank 0).
    point_id = jax.lax.broadcasted_iota(jnp.int32, (npts, tp), 0).astype(jnp.float32)
    on = point_id < cnt               # (max_points, TP)
    pad = jnp.float32(pad_value)

    def sel(v):
        return jnp.where(on, v, pad)

    if float(pad_value) == 0.0:
        # Empty slots already hold 0.0 (== pad_value) in the scattered slab: skip the select.
        out_ref[0, 0] = x
        out_ref[0, 1] = y
        out_ref[0, 2] = z
        out_ref[0, 3] = r
    else:
        out_ref[0, 0] = sel(x)
        out_ref[0, 1] = sel(y)
        out_ref[0, 2] = sel(z)
        out_ref[0, 3] = sel(r)
    out_ref[0, 4] = sel(jnp.abs(x - mean_x))
    out_ref[0, 5] = sel(jnp.abs(y - mean_y))
    out_ref[0, 6] = sel(jnp.abs(z - mean_z))
    out_ref[0, 7] = sel(cx - x)
    out_ref[0, 8] = sel(cy - y)


def _vmem_capacity_bytes():
    try:
        return int(pltpu.get_tpu_info().vmem_capacity_bytes)
    except Exception:
        return 64 * 1024 * 1024  # conservative (v7x per-TC VMEM)


def _choose_pillar_tile(max_pillars, max_points, vmem_cap_bytes):
    """Largest multiple-of-128 pillar tile whose double-buffered planes fit ~45% of VMEM
    and whose padding of max_pillars stays small (per-step overhead ~0.35us amortized)."""
    bytes_per_pillar = (13 * max_points + 16) * 4 * 2   # 13 f32 planes, double buffered
    budget_tp = int(vmem_cap_bytes * 0.45) // bytes_per_pillar
    hi = min(_round_up(max_pillars, 128), max(128, (budget_tp // 128) * 128))
    pad_cap = max(128, max_pillars // 20)               # <= ~5% padded pillars
    for cand in range(hi, 127, -128):
        if _round_up(max_pillars, cand) - max_pillars <= pad_cap:
            return cand
    return 128


# --------------------------------------------------------------------------------------
# Fixed-shape per-sample prep (vmapped over the batch)
# --------------------------------------------------------------------------------------
def _prep_sample(pts, pidx, *, max_points, max_pillars, mp_pad, num_x,
                 min_x, min_y, wx, wy):
    """pts: (P, 4) f32, pidx: (P,) int32 -> (4, max_points, mp_pad) planes,
    (6, mp_pad) pillar meta, (max_pillars,) output pillar ids."""
    P = pts.shape[0]
    int_max = jnp.iinfo(jnp.int32).max

    order = jnp.argsort(pidx, stable=True)
    s_idx = pidx[order]                                   # sorted pillar ids
    pos = jnp.arange(P, dtype=jnp.int32)
    is_first = jnp.concatenate([jnp.ones((1,), jnp.bool_), s_idx[1:] != s_idx[:-1]])
    u_rank = jnp.cumsum(is_first.astype(jnp.int32)) - 1   # pillar slot, sorted order
    seg_start = jax.lax.cummax(jnp.where(is_first, pos, 0), axis=0)
    rank_sorted = pos - seg_start                         # within-pillar rank

    slot = jnp.zeros((P,), jnp.int32).at[order].set(u_rank)       # per point, orig order
    rank = jnp.zeros((P,), jnp.int32).at[order].set(rank_sorted)

    # Sorted unique pillar ids, INT_MAX padded.
    # TODO(synk): torch randomly subsamples pillars when #unique > max_pillars; here the
    # lowest-index max_pillars pillars are kept (deterministic, fixed shapes).
    uniq = jnp.full((mp_pad,), int_max, jnp.int32).at[
        jnp.where(is_first, u_rank, mp_pad)].set(s_idx, mode="drop")
    out_pillars = jnp.where(uniq[:max_pillars] == int_max, -1,
                            uniq[:max_pillars]).astype(jnp.int32)

    keep_pillar = slot < max_pillars
    pil_scatter = jnp.where(keep_pillar, slot, mp_pad)             # OOB -> dropped

    # Per-pillar count and xyz means over ALL points of the pillar (torch accumulates
    # these before the max_points truncation).
    cnt = jnp.zeros((mp_pad,), jnp.float32).at[pil_scatter].add(1.0, mode="drop")
    safe = jnp.maximum(cnt, 1.0)
    mean_x = jnp.zeros((mp_pad,), jnp.float32).at[pil_scatter].add(pts[:, 0], mode="drop") / safe
    mean_y = jnp.zeros((mp_pad,), jnp.float32).at[pil_scatter].add(pts[:, 1], mode="drop") / safe
    mean_z = jnp.zeros((mp_pad,), jnp.float32).at[pil_scatter].add(pts[:, 2], mode="drop") / safe

    # Pillar xy centers (garbage for padded slots; masked away in the kernel via count==0).
    col = (uniq % num_x).astype(jnp.float32)
    row = (uniq // num_x).astype(jnp.float32)
    cx = min_x + col * wx + wx * 0.5
    cy = min_y + row * wy + wy * 0.5

    meta = jnp.stack([cnt, mean_x, mean_y, mean_z, cx, cy], axis=0)     # (6, mp_pad)

    # Dense point slab, lane-dense planes layout (4, max_points, mp_pad).
    keep = keep_pillar & (rank < max_points)
    flat = jnp.where(keep, rank * mp_pad + slot, max_points * mp_pad)   # OOB -> dropped
    planes = [jnp.zeros((max_points * mp_pad,), jnp.float32).at[flat].set(pts[:, c], mode="drop")
              for c in range(4)]
    pts_planes = jnp.stack(planes, axis=0).reshape(4, max_points, mp_pad)
    return pts_planes, meta, out_pillars


# --------------------------------------------------------------------------------------
# Forward wrapper
# --------------------------------------------------------------------------------------
def pillar_feature_generator(point_clouds, *, pillar_wh=(0.16, 0.16), max_points=100,
                             max_pillars=12000, xyz_range=None, pad_value=0.0,
                             pillar_tile=None, channels_last=True):
    """JAX/Pallas port of PillarFeatureGenerator.forward.

    point_clouds: (N, num_points, 4) float32 -> returns
      output        : (N, max_pillars, max_points, 9) f32   (channels_last=True, torch layout)
                      (N, 9, max_points, max_pillars) f32   (channels_last=False, lane-dense)
      output_pillars: (N, max_pillars) int32 (sorted pillar indexes, -1 padded)
    """
    xyz_range = xyz_range or [(-51.2, 51.2), (-51.2, 51.2), (-5.0, 3.0)]
    for lo_hi in xyz_range:
        assert lo_hi[1] > lo_hi[0]
    point_clouds = jnp.asarray(point_clouds, jnp.float32)
    N, P, D = point_clouds.shape
    assert D == 4

    min_xy, wh, _ = _grid_constants(xyz_range, pillar_wh)
    pidx_all, num_x = compute_pillar_index(point_clouds, xyz_range, pillar_wh)  # (N, P) int32

    vmem_cap = _vmem_capacity_bytes()
    tp = pillar_tile or _choose_pillar_tile(max_pillars, max_points, vmem_cap)
    assert tp % 128 == 0, "pillar tile must be a multiple of 128 (lane dim)"
    mp_pad = _round_up(max_pillars, tp)

    # -------- batched fixed-shape prep (unique / rank / scatter / per-pillar stats) -----
    prep = functools.partial(
        _prep_sample, max_points=max_points, max_pillars=max_pillars, mp_pad=mp_pad,
        num_x=num_x, min_x=float(min_xy[0]), min_y=float(min_xy[1]),
        wx=float(wh[0]), wy=float(wh[1]))
    pts_planes, meta, output_pillars = jax.vmap(prep)(point_clouds, pidx_all)
    # pts_planes: (N, 4, max_points, mp_pad)   meta: (N, 6, mp_pad)

    # -------- Pallas kernel over (batch, pillar tiles) ----------------------------------
    grid = (N, mp_pad // tp)
    kernel = functools.partial(pillar_feature_kernel, pad_value=float(pad_value))
    vmem_used = 2 * tp * 4 * (13 * max_points + 16)
    vmem_limit = min(int(vmem_cap * 0.9), max(vmem_used + (4 << 20), 32 << 20))

    out_planes = pl.pallas_call(
        kernel,
        grid=grid,
        in_specs=[
            pl.BlockSpec((1, 4, max_points, tp), lambda b, t: (b, 0, 0, t)),
            pl.BlockSpec((1, 6, tp), lambda b, t: (b, 0, t)),
        ],
        out_specs=pl.BlockSpec((1, 9, max_points, tp), lambda b, t: (b, 0, 0, t)),
        out_shape=jax.ShapeDtypeStruct((N, 9, max_points, mp_pad), jnp.float32),
        compiler_params=pltpu.CompilerParams(
            dimension_semantics=("parallel", "parallel"),
            vmem_limit_bytes=vmem_limit),
    )(pts_planes, meta)

    if not channels_last:
        # Lane-dense planes layout for a fused consumer (PFN contracts over axis 1).
        return out_planes[:, :, :, :max_pillars], output_pillars

    # TODO(synk): this final reorder is pure layout required by the torch contract; a fused
    # downstream PFN should take channels_last=False and skip the extra HBM pass.
    output = jnp.transpose(out_planes[:, :, :, :max_pillars], (0, 3, 2, 1))
    return output, output_pillars


# --------------------------------------------------------------------------------------
# NumPy reference (faithful port of the torch forward; test regime: #unique <= max_pillars)
# --------------------------------------------------------------------------------------
def reference_forward(point_clouds, pillar_wh, max_points, max_pillars, xyz_range,
                      pad_value=0.0):
    pts = np.asarray(point_clouds, np.float32)
    N = pts.shape[0]
    pidx_all, num_x = compute_pillar_index(point_clouds, xyz_range, pillar_wh)
    pidx_all = np.asarray(pidx_all)
    min_xy = np.array([xyz_range[0][0], xyz_range[1][0]], np.float32)
    wh = np.array(pillar_wh, np.float32)

    out = np.full((N, max_pillars, max_points, 9), np.nan, np.float32)
    out_pillars = np.full((N, max_pillars), -1, np.int32)
    for i in range(N):
        pidx = pidx_all[i]
        uniq = np.unique(pidx)                           # sorted
        assert uniq.shape[0] <= max_pillars
        num_p = uniq.shape[0]
        out_pillars[i, :num_p] = uniq
        centers = (min_xy
                   + np.stack([uniq % num_x, uniq // num_x], -1).astype(np.float32) * wh
                   + wh * 0.5)

        slot = np.searchsorted(uniq, pidx)
        order = np.argsort(slot, kind="stable")          # stable -> original order in a pillar
        s_slot = slot[order]
        s_pts = pts[i][order]

        sums = np.zeros((num_p, 3), np.float32)
        np.add.at(sums, s_slot, s_pts[:, :3])
        cnts = np.bincount(s_slot, minlength=num_p)
        mean = sums / cnts[:, None].astype(np.float32)

        offsets = np.concatenate([np.zeros(1, np.int64), np.cumsum(cnts)])
        rank = np.arange(s_slot.shape[0]) - offsets[s_slot]
        keep = rank < max_points

        sample = np.full((num_p * max_points, 9), np.nan, np.float32)
        flat = (s_slot[keep] * max_points + rank[keep]).astype(np.int64)
        sample[flat, :4] = s_pts[keep]
        sample = sample.reshape(num_p, max_points, 9)
        sample[..., 4:7] = np.abs(sample[..., :3] - mean[:, None, :])
        sample[..., 7:9] = centers[:, None, :] - sample[..., :2]
        out[i, :num_p] = sample
    out[np.isnan(out)] = pad_value
    return out, out_pillars


# --------------------------------------------------------------------------------------
if __name__ == "__main__":
    N, num_points = 2, 256
    max_pillars, max_points = 256, 32
    pillar_wh = (0.16, 0.16)
    xyz_range = [(-51.2, 51.2), (-51.2, 51.2), (-5.0, 3.0)]
    pad_value = 0.0

    key = jax.random.PRNGKey(0)
    k_xy, k_z, k_r = jax.random.split(key, 3)
    # xy concentrated in a small region so several pillars contain multiple points.
    xy = jax.random.uniform(k_xy, (N, num_points, 2), minval=-2.0, maxval=2.0)
    z = jax.random.uniform(k_z, (N, num_points, 1), minval=-3.0, maxval=1.0)
    refl = jax.random.uniform(k_r, (N, num_points, 1), minval=0.0, maxval=1.0)
    point_clouds = jnp.concatenate([xy, z, refl], axis=-1).astype(jnp.float32)

    fwd = jax.jit(functools.partial(
        pillar_feature_generator, pillar_wh=pillar_wh, max_points=max_points,
        max_pillars=max_pillars, xyz_range=xyz_range, pad_value=pad_value,
        pillar_tile=128))                     # grid (N, 2): exercises the pillar tiling
    out, out_pillars = fwd(point_clouds)
    out = jax.block_until_ready(out)
    out_pillars = jax.block_until_ready(out_pillars)

    ref_out, ref_pillars = reference_forward(point_clouds, pillar_wh, max_points,
                                             max_pillars, xyz_range, pad_value)

    assert out.shape == (N, max_pillars, max_points, 9)
    assert out_pillars.shape == (N, max_pillars)
    assert np.array_equal(np.asarray(out_pillars), ref_pillars)
    assert np.allclose(np.asarray(out), ref_out, atol=1e-4, rtol=1e-4)
    print("KERNEL_OK")
</pallas_src>

<mosaic_0001>
module attributes {stable_mosaic.version = 11 : i64} {
  func.func @pillar_feature_kernel(%arg0: i32, %arg1: i32, %arg2: memref<1x4x32x128xf32, #tpu.memory_space<vmem>>, %arg3: memref<1x6x128xf32, #tpu.memory_space<vmem>>, %arg4: memref<1x9x32x128xf32, #tpu.memory_space<vmem>>) attributes {dimension_semantics = [#tpu.dimension_semantics<parallel>, #tpu.dimension_semantics<parallel>], iteration_bounds = array<i64: 2, 2>, scalar_prefetch = 0 : i64, scratch_operands = 0 : i64, tpu.core_type = #tpu.core_type<tc>, window_params = [{transform_indices = @transform_0, window_bounds = array<i64: 1, 4, 32, 128>}, {transform_indices = @transform_1, window_bounds = array<i64: 1, 6, 128>}, {transform_indices = @transform_2, window_bounds = array<i64: 1, 9, 32, 128>}]} {
    %c0 = arith.constant 0 : index
    %c0_0 = arith.constant 0 : index
    %c0_1 = arith.constant 0 : index
    %c0_2 = arith.constant 0 : index
    %0 = vector.load %arg2[%c0, %c0_0, %c0_1, %c0_2] : memref<1x4x32x128xf32, #tpu.memory_space<vmem>>, vector<1x1x32x128xf32>
    %1 = vector.shape_cast %0 : vector<1x1x32x128xf32> to vector<32x128xf32>
    %c0_3 = arith.constant 0 : index
    %c1 = arith.constant 1 : index
    %c0_4 = arith.constant 0 : index
    %c0_5 = arith.constant 0 : index
    %2 = vector.load %arg2[%c0_3, %c1, %c0_4, %c0_5] : memref<1x4x32x128xf32, #tpu.memory_space<vmem>>, vector<1x1x32x128xf32>
    %3 = vector.shape_cast %2 : vector<1x1x32x128xf32> to vector<32x128xf32>
    %c0_6 = arith.constant 0 : index
    %c2 = arith.constant 2 : index
    %c0_7 = arith.constant 0 : index
    %c0_8 = arith.constant 0 : index
    %4 = vector.load %arg2[%c0_6, %c2, %c0_7, %c0_8] : memref<1x4x32x128xf32, #tpu.memory_space<vmem>>, vector<1x1x32x128xf32>
    %5 = vector.shape_cast %4 : vector<1x1x32x128xf32> to vector<32x128xf32>
    %c0_9 = arith.constant 0 : index
    %c3 = arith.constant 3 : index
    %c0_10 = arith.constant 0 : index
    %c0_11 = arith.constant 0 : index
    %6 = vector.load %arg2[%c0_9, %c3, %c0_10, %c0_11] : memref<1x4x32x128xf32, #tpu.memory_space<vmem>>, vector<1x1x32x128xf32>
    %7 = vector.shape_cast %6 : vector<1x1x32x128xf32> to vector<32x128xf32>
    %c0_12 = arith.constant 0 : index
    %c0_13 = arith.constant 0 : index
    %c0_14 = arith.constant 0 : index
    %8 = vector.load %arg3[%c0_12, %c0_13, %c0_14] : memref<1x6x128xf32, #tpu.memory_space<vmem>>, vector<1x1x128xf32>
    %9 = vector.shape_cast %8 : vector<1x1x128xf32> to vector<1x128xf32>
    %c0_15 = arith.constant 0 : index
    %c1_16 = arith.constant 1 : index
    %c0_17 = arith.constant 0 : index
    %10 = vector.load %arg3[%c0_15, %c1_16, %c0_17] : memref<1x6x128xf32, #tpu.memory_space<vmem>>, vector<1x1x128xf32>
    %11 = vector.shape_cast %10 : vector<1x1x128xf32> to vector<1x128xf32>
    %c0_18 = arith.constant 0 : index
    %c2_19 = arith.constant 2 : index
    %c0_20 = arith.constant 0 : index
    %12 = vector.load %arg3[%c0_18, %c2_19, %c0_20] : memref<1x6x128xf32, #tpu.memory_space<vmem>>, vector<1x1x128xf32>
    %13 = vector.shape_cast %12 : vector<1x1x128xf32> to vector<1x128xf32>
    %c0_21 = arith.constant 0 : index
    %c3_22 = arith.constant 3 : index
    %c0_23 = arith.constant 0 : index
    %14 = vector.load %arg3[%c0_21, %c3_22, %c0_23] : memref<1x6x128xf32, #tpu.memory_space<vmem>>, vector<1x1x128xf32>
    %15 = vector.shape_cast %14 : vector<1x1x128xf32> to vector<1x128xf32>
    %c0_24 = arith.constant 0 : index
    %c4 = arith.constant 4 : index
    %c0_25 = arith.constant 0 : index
    %16 = vector.load %arg3[%c0_24, %c4, %c0_25] : memref<1x6x128xf32, #tpu.memory_space<vmem>>, vector<1x1x128xf32>
    %17 = vector.shape_cast %16 : vector<1x1x128xf32> to vector<1x128xf32>
    %c0_26 = arith.constant 0 : index
    %c5 = arith.constant 5 : index
    %c0_27 = arith.constant 0 : index
    %18 = vector.load %arg3[%c0_26, %c5, %c0_27] : memref<1x6x128xf32, #tpu.memory_space<vmem>>, vector<1x1x128xf32>
    %19 = vector.shape_cast %18 : vector<1x1x128xf32> to vector<1x128xf32>
    %20 = tpu.iota {dimensions = array<i32: 0>} : vector<32x128xi32>
    %21 = arith.sitofp %20 : vector<32x128xi32> to vector<32x128xf32>
    %22 = vector.broadcast %9 : vector<1x128xf32> to vector<32x128xf32>
    %23 = arith.cmpf olt, %21, %22 : vector<32x128xf32>
    %c0_28 = arith.constant 0 : index
    %c0_29 = arith.constant 0 : index
    %c0_30 = arith.constant 0 : index
    %c0_31 = arith.constant 0 : index
    %24 = vector.load %arg4[%c0_28, %c0_29, %c0_30, %c0_31] : memref<1x9x32x128xf32, #tpu.memory_space<vmem>>, vector<1x1x32x128xf32>
    %25 = vector.shape_cast %24 : vector<1x1x32x128xf32> to vector<32x128xf32>
    %26 = vector.shape_cast %1 : vector<32x128xf32> to vector<1x1x32x128xf32>
    tpu.vector_store %arg4[%c0_28, %c0_29, %c0_30, %c0_31], %26 {strides = array<i32>} : memref<1x9x32x128xf32, #tpu.memory_space<vmem>>, vector<1x1x32x128xf32>,
    %c0_32 = arith.constant 0 : index
    %c1_33 = arith.constant 1 : index
    %c0_34 = arith.constant 0 : index
    %c0_35 = arith.constant 0 : index
    %27 = vector.load %arg4[%c0_32, %c1_33, %c0_34, %c0_35] : memref<1x9x32x128xf32, #tpu.memory_space<vmem>>, vector<1x1x32x128xf32>
    %28 = vector.shape_cast %27 : vector<1x1x32x128xf32> to vector<32x128xf32>
    %29 = vector.shape_cast %3 : vector<32x128xf32> to vector<1x1x32x128xf32>
    tpu.vector_store %arg4[%c0_32, %c1_33, %c0_34, %c0_35], %29 {strides = array<i32>} : memref<1x9x32x128xf32, #tpu.memory_space<vmem>>, vector<1x1x32x128xf32>,
    %c0_36 = arith.constant 0 : index
    %c2_37 = arith.constant 2 : index
    %c0_38 = arith.constant 0 : index
    %c0_39 = arith.constant 0 : index
    %30 = vector.load %arg4[%c0_36, %c2_37, %c0_38, %c0_39] : memref<1x9x32x128xf32, #tpu.memory_space<vmem>>, vector<1x1x32x128xf32>
    %31 = vector.shape_cast %30 : vector<1x1x32x128xf32> to vector<32x128xf32>
    %32 = vector.shape_cast %5 : vector<32x128xf32> to vector<1x1x32x128xf32>
    tpu.vector_store %arg4[%c0_36, %c2_37, %c0_38, %c0_39], %32 {strides = array<i32>} : memref<1x9x32x128xf32, #tpu.memory_space<vmem>>, vector<1x1x32x128xf32>,
    %c0_40 = arith.constant 0 : index
    %c3_41 = arith.constant 3 : index
    %c0_42 = arith.constant 0 : index
    %c0_43 = arith.constant 0 : index
    %33 = vector.load %arg4[%c0_40, %c3_41, %c0_42, %c0_43] : memref<1x9x32x128xf32, #tpu.memory_space<vmem>>, vector<1x1x32x128xf32>
    %34 = vector.shape_cast %33 : vector<1x1x32x128xf32> to vector<32x128xf32>
    %35 = vector.shape_cast %7 : vector<32x128xf32> to vector<1x1x32x128xf32>
    tpu.vector_store %arg4[%c0_40, %c3_41, %c0_42, %c0_43], %35 {strides = array<i32>} : memref<1x9x32x128xf32, #tpu.memory_space<vmem>>, vector<1x1x32x128xf32>,
    %36 = vector.broadcast %11 : vector<1x128xf32> to vector<32x128xf32>
    %37 = arith.subf %1, %36 : vector<32x128xf32>
    %38 = math.absf %37 : vector<32x128xf32>
    %cst = arith.constant 0.000000e+00 : f32
    %39 = vector.broadcast %cst : f32 to vector<32x128xf32>
    %40 = arith.select %23, %38, %39 : vector<32x128xi1>, vector<32x128xf32>
    %c0_44 = arith.constant 0 : index
    %c4_45 = arith.constant 4 : index
    %c0_46 = arith.constant 0 : index
    %c0_47 = arith.constant 0 : index
    %41 = vector.load %arg4[%c0_44, %c4_45, %c0_46, %c0_47] : memref<1x9x32x128xf32, #tpu.memory_space<vmem>>, vector<1x1x32x128xf32>
    %42 = vector.shape_cast %41 : vector<1x1x32x128xf32> to vector<32x128xf32>
    %43 = vector.shape_cast %40 : vector<32x128xf32> to vector<1x1x32x128xf32>
    tpu.vector_store %arg4[%c0_44, %c4_45, %c0_46, %c0_47], %43 {strides = array<i32>} : memref<1x9x32x128xf32, #tpu.memory_space<vmem>>, vector<1x1x32x128xf32>,
    %44 = vector.broadcast %13 : vector<1x128xf32> to vector<32x128xf32>
    %45 = arith.subf %3, %44 : vector<32x128xf32>
    %46 = math.absf %45 : vector<32x128xf32>
    %cst_48 = arith.constant 0.000000e+00 : f32
    %47 = vector.broadcast %cst_48 : f32 to vector<32x128xf32>
    %48 = arith.select %23, %46, %47 : vector<32x128xi1>, vector<32x128xf32>
    %c0_49 = arith.constant 0 : index
    %c5_50 = arith.constant 5 : index
    %c0_51 = arith.constant 0 : index
    %c0_52 = arith.constant 0 : index
    %49 = vector.load %arg4[%c0_49, %c5_50, %c0_51, %c0_52] : memref<1x9x32x128xf32, #tpu.memory_space<vmem>>, vector<1x1x32x128xf32>
    %50 = vector.shape_cast %49 : vector<1x1x32x128xf32> to vector<32x128xf32>
    %51 = vector.shape_cast %48 : vector<32x128xf32> to vector<1x1x32x128xf32>
    tpu.vector_store %arg4[%c0_49, %c5_50, %c0_51, %c0_52], %51 {strides = array<i32>} : memref<1x9x32x128xf32, #tpu.memory_space<vmem>>, vector<1x1x32x128xf32>,
    %52 = vector.broadcast %15 : vector<1x128xf32> to vector<32x128xf32>
    %53 = arith.subf %5, %52 : vector<32x128xf32>
    %54 = math.absf %53 : vector<32x128xf32>
    %cst_53 = arith.constant 0.000000e+00 : f32
    %55 = vector.broadcast %cst_53 : f32 to vector<32x128xf32>
    %56 = arith.select %23, %54, %55 : vector<32x128xi1>, vector<32x128xf32>
    %c0_54 = arith.constant 0 : index
    %c6 = arith.constant 6 : index
    %c0_55 = arith.constant 0 : index
    %c0_56 = arith.constant 0 : index
    %57 = vector.load %arg4[%c0_54, %c6, %c0_55, %c0_56] : memref<1x9x32x128xf32, #tpu.memory_space<vmem>>, vector<1x1x32x128xf32>
    %58 = vector.shape_cast %57 : vector<1x1x32x128xf32> to vector<32x128xf32>
    %59 = vector.shape_cast %56 : vector<32x128xf32> to vector<1x1x32x128xf32>
    tpu.vector_store %arg4[%c0_54, %c6, %c0_55, %c0_56], %59 {strides = array<i32>} : memref<1x9x32x128xf32, #tpu.memory_space<vmem>>, vector<1x1x32x128xf32>,
    %60 = vector.broadcast %17 : vector<1x128xf32> to vector<32x128xf32>
    %61 = arith.subf %60, %1 : vector<32x128xf32>
    %cst_57 = arith.constant 0.000000e+00 : f32
    %62 = vector.broadcast %cst_57 : f32 to vector<32x128xf32>
    %63 = arith.select %23, %61, %62 : vector<32x128xi1>, vector<32x128xf32>
    %c0_58 = arith.constant 0 : index
    %c7 = arith.constant 7 : index
    %c0_59 = arith.constant 0 : index
    %c0_60 = arith.constant 0 : index
    %64 = vector.load %arg4[%c0_58, %c7, %c0_59, %c0_60] : memref<1x9x32x128xf32, #tpu.memory_space<vmem>>, vector<1x1x32x128xf32>
    %65 = vector.shape_cast %64 : vector<1x1x32x128xf32> to vector<32x128xf32>
    %66 = vector.shape_cast %63 : vector<32x128xf32> to vector<1x1x32x128xf32>
    tpu.vector_store %arg4[%c0_58, %c7, %c0_59, %c0_60], %66 {strides = array<i32>} : memref<1x9x32x128xf32, #tpu.memory_space<vmem>>, vector<1x1x32x128xf32>,
    %67 = vector.broadcast %19 : vector<1x128xf32> to vector<32x128xf32>
    %68 = arith.subf %67, %3 : vector<32x128xf32>
    %cst_61 = arith.constant 0.000000e+00 : f32
    %69 = vector.broadcast %cst_61 : f32 to vector<32x128xf32>
    %70 = arith.select %23, %68, %69 : vector<32x128xi1>, vector<32x128xf32>
    %c0_62 = arith.constant 0 : index
    %c8 = arith.constant 8 : index
    %c0_63 = arith.constant 0 : index
    %c0_64 = arith.constant 0 : index
    %71 = vector.load %arg4[%c0_62, %c8, %c0_63, %c0_64] : memref<1x9x32x128xf32, #tpu.memory_space<vmem>>, vector<1x1x32x128xf32>
    %72 = vector.shape_cast %71 : vector<1x1x32x128xf32> to vector<32x128xf32>
    %73 = vector.shape_cast %70 : vector<32x128xf32> to vector<1x1x32x128xf32>
    tpu.vector_store %arg4[%c0_62, %c8, %c0_63, %c0_64], %73 {strides = array<i32>} : memref<1x9x32x128xf32, #tpu.memory_space<vmem>>, vector<1x1x32x128xf32>,
    return
  }
  func.func @transform_0(%arg0: i32, %arg1: i32) -> (i32, i32, i32, i32) {
    %c0_i32 = arith.constant 0 : i32
    %c0_i32_0 = arith.constant 0 : i32
    %c0_i32_1 = arith.constant 0 : i32
    return %arg0, %c0_i32, %c0_i32_0, %arg1 : i32, i32, i32, i32
  }
  func.func @transform_1(%arg0: i32, %arg1: i32) -> (i32, i32, i32) {
    %c0_i32 = arith.constant 0 : i32
    %c0_i32_0 = arith.constant 0 : i32
    return %arg0, %c0_i32, %arg1 : i32, i32, i32
  }
  func.func @transform_2(%arg0: i32, %arg1: i32) -> (i32, i32, i32, i32) {
    %c0_i32 = arith.constant 0 : i32
    %c0_i32_0 = arith.constant 0 : i32
    %c0_i32_1 = arith.constant 0 : i32
    return %arg0, %c0_i32, %c0_i32_0, %arg1 : i32, i32, i32, i32
  }
}

</mosaic_0001>

<llo_original>
// kernel: pillar_feature_generator.1
$region0: #{pillar_feature_generator.1}
  #allocation0 [shape = 'u32[]', space=smem, size = 0x4, offset = 0x4, fixed_abs, tag = 'smem constant byte address 0x4 - core index']
  #allocation1 [shape = 'u32[72,128]{1,0:T(1,128)}', space=vmem, size = 0x9000, scoped, tag = 'internal scratch']
  %s0 = inlined_call_operand.vmem [shape: f32[2,4,32,256], index: 0, kind: input, shape index: {}]
  %s1 = inlined_call_operand.vmem [shape: f32[2,6,256], index: 1, kind: input, shape index: {}]
  %s2 = inlined_call_operand.hbm [shape: f32[2,9,32,256], index: 2, kind: output, shape index: {}]
  %s3 = sld [smem:[#allocation0]]
  $region79: #{pillar_feature_generator.1} parent=0
    _
  %s5 = ssub.s32 1, %s3
  %s6 = scalar_select 0, %s5, %s3
  $region1: #{pillar_feature_generator.1} parent=0
    #allocation2 [shape = 'u8[131072]{0}', space=vmem, size = 0x20000, scoped, tag = 'input window, operand 0']
    #allocation3 [shape = 'u8[294912]{0}', space=vmem, size = 0x48000, scoped, tag = 'output window, operand 0']
    #allocation4 [shape = 's32[2]{0}', space=sflag, size = 0x8, scoped, tag = 'scoped memory for pillar_feature_generator.1']
    %7 = vsyncpa [#allocation4], 0
    %s8 = scalar_lea.sflag [#allocation4], 1
    %9 = vsyncpa %s8, 0
    loop: start=0, step=1, limit=6
    $region2: #{pillar_feature_generator.1} parent=1 // loop_pre_header
      _
    $region3: #{pillar_feature_generator.1} parent=1 // loop_header
      %s11 = sphi 0, %s15
      %p12 = scmp.ge.s32.totalorder %s11, 6
      %s18 = sphi 0, %s30
      %s19 = sphi 0, %s26
      %s20 = sphi 0, %s18
      %s21 = sphi 0, %s19
      %s22 = sphi 0, %s20
      %s23 = sphi 0, %s21
      %s35 = sphi 0, %s37
      %s38 = sphi 0, %s35
      %s39 = sphi 0, %s38
      %s55 = sphi 0, %s39
      %s63 = sphi 0, %s65
      %s66 = sphi 0, %s63
      %s67 = sphi 0, %s66
      %s83 = sphi 0, %s67
      %s91 = sphi 0, %s93
      %s94 = sphi 0, %s91
      %s95 = sphi 0, %s94
      %s111 = sphi 0, %s95
    $region4: #{pillar_feature_generator.1} parent=1 // loop_header_branch
      %14 = sbr.rel (%p12) target = $region8
    $region5: #{pillar_feature_generator.1} parent=1 // loop_body
      %s16 = ssub.s32 %s11, 1
      %s17 = ssub.s32 %s11, 2
      %s24 = sadd.s32 1, %s19
      %p25 = scmp.ge.s32.totalorder %s24, 2
      %s26 = scalar_select %p25, 0, %s24
      %s27 = sadd.s32 1, %s18
      %s28 = scalar_select %p25, %s27, %s18
      %p29 = scmp.ge.s32.totalorder %s28, 2
      %s30 = scalar_select %p29, 0, %s28
      %s31 = ssub.s32 %s18, %s30
      %s32 = ssub.s32 %s19, %s26
      %s33 = sor.u32 %s31, %s32
      %p34 = scmp.eq.s32.totalorder %s33, 0
      %s36 = sadd.s32 %s35, 1
      %s37 = scalar_select %p34, %s35, %s36
      %p40 = pneg %p34
      %p41 = scmp.eq.s32.totalorder %s11, 3
      %p42 = por %p40, %p41
      %p43 = scmp.ne.s32.totalorder %s35, %s38
      %p44 = scmp.eq.s32.totalorder %s11, 0
      %p45 = por %p43, %p44
      %p46 = scmp.ne.s32.totalorder %s35, %s38
      %p47 = scmp.eq.s32.totalorder %s16, 3
      %p48 = por %p46, %p47
      %p49 = scmp.ne.s32.totalorder %s38, %s39
      %p50 = scmp.eq.s32.totalorder %s16, 0
      %p51 = por %p49, %p50
      %p52 = scmp.ne.s32.totalorder %s38, %s39
      %p53 = scmp.eq.s32.totalorder %s17, 3
      %p54 = por %p52, %p53
      %p56 = scmp.ne.s32.totalorder %s39, %s55
      %p57 = scmp.eq.s32.totalorder %s17, 0
      %p58 = por %p56, %p57
      %s59 = ssub.s32 %s18, %s30
      %s60 = ssub.s32 %s19, %s26
      %s61 = sor.u32 %s59, %s60
      %p62 = scmp.eq.s32.totalorder %s61, 0
      %s64 = sadd.s32 %s63, 1
      %s65 = scalar_select %p62, %s63, %s64
      %p68 = pneg %p62
      %p69 = scmp.eq.s32.totalorder %s11, 3
      %p70 = por %p68, %p69
      %p71 = scmp.ne.s32.totalorder %s63, %s66
      %p72 = scmp.eq.s32.totalorder %s11, 0
      %p73 = por %p71, %p72
      %p74 = scmp.ne.s32.totalorder %s63, %s66
      %p75 = scmp.eq.s32.totalorder %s16, 3
      %p76 = por %p74, %p75
      %p77 = scmp.ne.s32.totalorder %s66, %s67
      %p78 = scmp.eq.s32.totalorder %s16, 0
      %p79 = por %p77, %p78
      %p80 = scmp.ne.s32.totalorder %s66, %s67
      %p81 = scmp.eq.s32.totalorder %s17, 3
      %p82 = por %p80, %p81
      %p84 = scmp.ne.s32.totalorder %s67, %s83
      %p85 = scmp.eq.s32.totalorder %s17, 0
      %p86 = por %p84, %p85
      %s87 = ssub.s32 %s18, %s30
      %s88 = ssub.s32 %s19, %s26
      %s89 = sor.u32 %s87, %s88
      %p90 = scmp.eq.s32.totalorder %s89, 0
      %s92 = sadd.s32 %s91, 1
      %s93 = scalar_select %p90, %s91, %s92
      %p96 = pneg %p90
      %p97 = scmp.eq.s32.totalorder %s11, 3
      %p98 = por %p96, %p97
      %p99 = scmp.ne.s32.totalorder %s91, %s94
      %p100 = scmp.eq.s32.totalorder %s11, 0
      %p101 = por %p99, %p100
      %p102 = scmp.ne.s32.totalorder %s91, %s94
      %p103 = scmp.eq.s32.totalorder %s16, 3
      %p104 = por %p102, %p103
      %p105 = scmp.ne.s32.totalorder %s94, %s95
      %p106 = scmp.eq.s32.totalorder %s16, 0
      %p107 = por %p105, %p106
      %p108 = scmp.ne.s32.totalorder %s94, %s95
      %p109 = scmp.eq.s32.totalorder %s17, 3
      %p110 = por %p108, %p109
      %p112 = scmp.ne.s32.totalorder %s95, %s111
      %p113 = scmp.eq.s32.totalorder %s17, 0
      %p114 = por %p112, %p113
      %p115 = scmp.le.s32.totalorder 1, %s11
      %p116 = scmp.lt.s32.totalorder %s11, 5
      %p117 = pnand %p115, %p116
      %p118 = pneg %p117
      // Predicated region
      $region9: #{pillar_feature_generator.1} parent=5 // pred_check
        _
      $region10: #{pillar_feature_generator.1} parent=5 // pred_check_branch
        %120 = sbr.rel (%p117) target = $region12
      $region11: #{pillar_feature_generator.1} parent=5 // pred_region
        %s121 = ssub.s32 %s11, 1
      $region12: #{pillar_feature_generator.1} parent=5 // pred_fallthru
        _
      %p122 = scmp.lt.s32.totalorder %s11, 4
      // Predicated region
      $region13: #{pillar_feature_generator.1} parent=5 // pred_check
        %p123 = pneg %p122
      $region14: #{pillar_feature_generator.1} parent=5 // pred_check_branch
        %125 = sbr.rel (%p123) target = $region16
      $region15: #{pillar_feature_generator.1} parent=5 // pred_region
        // Predicated region
        $region17: #{pillar_feature_generator.1} parent=15 // pred_check
          %p126 = pneg %p45
        $region18: #{pillar_feature_generator.1} parent=15 // pred_check_branch
          %128 = sbr.rel (%p126) target = $region20
        $region19: #{pillar_feature_generator.1} parent=15 // pred_region
          %s129 = sand.u32 %s35, 1
          %s130 = sand.u32 %s35, 1
          %s131 = smul.addr %s130, 128
          %s132 = scalar_lea.vmem [#allocation2], %s131
          %s133 = smul.addr %s18, 32
          %s134 = sadd.s32 %s19, %s133
          %s135 = smul.addr %s134, 8
          %s136 = scalar_lea.vmem %s0, %s135
          // Predicated region
          $region21: #{pillar_feature_generator.1} parent=19 // pred_check
            _
          $region22: #{pillar_feature_generator.1} parent=19 // pred_check_branch
            %138 = sbr.rel (0) target = $region24
          $region23: #{pillar_feature_generator.1} parent=19 // pred_region
            // Predicated region
            $region25: #{pillar_feature_generator.1} parent=23 // pred_check
              _
            $region26: #{pillar_feature_generator.1} parent=23 // pred_check_branch
              %140 = sbr.rel (0) target = $region28
            $region27: #{pillar_feature_generator.1} parent=23 // pred_region
              // Predicated region
              $region40: #{pillar_feature_generator.1} parent=27 // pred_check
                _
              $region41: #{pillar_feature_generator.1} parent=27 // pred_check_branch
                %186 = sbr.rel (0) target = $region43
              $region42: #{pillar_feature_generator.1} parent=27 // pred_region
                loop: start=0, step=1, limit=1
                $region44: #{pillar_feature_generator.1} parent=42 // loop_pre_header
                  _
                $region45: #{pillar_feature_generator.1} parent=42 // loop_header
                  %s188 = sphi 0, %s192
                  %p189 = scmp.ge.s32.totalorder %s188, 1
                  %s193 = sphi %s136, %s136
                  %s194 = sphi %s132, %s132
                $region46: #{pillar_feature_generator.1} parent=42 // loop_header_branch
                  %191 = sbr.rel (%p189) target = $region50
                $region47: #{pillar_feature_generator.1} parent=42 // loop_body
                  %v195 = vld [vmem:[%s193] sm:$0xff]
                  %196 = vst [vmem:[%s194] sm:$0xff] %v195
                  %v197 = vld [vmem:[%s193 + $0x10] sm:$0xff]
                  %198 = vst [vmem:[%s194 + $0x8] sm:$0xff] %v197
                  %v199 = vld [vmem:[%s193 + $0x20] sm:$0xff]
                  %200 = vst [vmem:[%s194 + $0x10] sm:$0xff] %v199
                  %v201 = vld [vmem:[%s193 + $0x30] sm:$0xff]
                  %202 = vst [vmem:[%s194 + $0x18] sm:$0xff] %v201
                  %v203 = vld [vmem:[%s193 + $0x40] sm:$0xff]
                  %204 = vst [vmem:[%s194 + $0x20] sm:$0xff] %v203
                  %v205 = vld [vmem:[%s193 + $0x50] sm:$0xff]
                  %206 = vst [vmem:[%s194 + $0x28] sm:$0xff] %v205
                  %v207 = vld [vmem:[%s193 + $0x60] sm:$0xff]
                  %208 = vst [vmem:[%s194 + $0x30] sm:$0xff] %v207
                  %v209 = vld [vmem:[%s193 + $0x70] sm:$0xff]
                  %210 = vst [vmem:[%s194 + $0x38] sm:$0xff] %v209
                  %v211 = vld [vmem:[%s193 + $0x80] sm:$0xff]
                  %212 = vst [vmem:[%s194 + $0x40] sm:$0xff] %v211
                  %v213 = vld [vmem:[%s193 + $0x90] sm:$0xff]
                  %214 = vst [vmem:[%s194 + $0x48] sm:$0xff] %v213
                  %v215 = vld [vmem:[%s193 + $0xa0] sm:$0xff]
                  %216 = vst [vmem:[%s194 + $0x50] sm:$0xff] %v215
                  %v217 = vld [vmem:[%s193 + $0xb0] sm:$0xff]
                  %218 = vst [vmem:[%s194 + $0x58] sm:$0xff] %v217
                  %v219 = vld [vmem:[%s193 + $0xc0] sm:$0xff]
                  %220 = vst [vmem:[%s194 + $0x60] sm:$0xff] %v219
                  %v221 = vld [vmem:[%s193 + $0xd0] sm:$0xff]
                  %222 = vst [vmem:[%s194 + $0x68] sm:$0xff] %v221
                  %v223 = vld [vmem:[%s193 + $0xe0] sm:$0xff]
                  %224 = vst [vmem:[%s194 + $0x70] sm:$0xff] %v223
                  %v225 = vld [vmem:[%s193 + $0xf0] sm:$0xff]
                  %226 = vst [vmem:[%s194 + $0x78] sm:$0xff] %v225
                $region48: #{pillar_feature_generator.1} parent=42 // loop_footer
                  %s192 = sadd.s32 1, %s188
                $region49: #{pillar_feature_generator.1} parent=42 // loop_footer_branch
                  %187 = sbr.rel target = $region45
                $region50: #{pillar_feature_generator.1} parent=42 // loop_exit
                  _
              $region43: #{pillar_feature_generator.1} parent=27 // pred_fallthru
                _
              // Predicated region
              $region51: #{pillar_feature_generator.1} parent=27 // pred_check
                _
              $region52: #{pillar_feature_generator.1} parent=27 // pred_check_branch
                %228 = sbr.rel target = $region54
              $region53: #{pillar_feature_generator.1} parent=27 // pred_region
                _
              $region54: #{pillar_feature_generator.1} parent=27 // pred_fallthru
                _
            $region28: #{pillar_feature_generator.1} parent=23 // pred_fallthru
              _
            // Predicated region
            $region29: #{pillar_feature_generator.1} parent=23 // pred_check
              _
            $region30: #{pillar_feature_generator.1} parent=23 // pred_check_branch
              %142 = sbr.rel target = $region32
            $region31: #{pillar_feature_generator.1} parent=23 // pred_region
              %s144 = ssub.s32 256, 1
              loop: start=0, step=1, limit=1
              $region33: #{pillar_feature_generator.1} parent=31 // loop_pre_header
                _
              $region34: #{pillar_feature_generator.1} parent=31 // loop_header
                %s146 = sphi 0, %s150
                %p147 = scmp.ge.s32.totalorder %s146, 1
                %s151 = sphi %s136, %s136
                %s152 = sphi %s132, %s132
              $region35: #{pillar_feature_generator.1} parent=31 // loop_header_branch
                %149 = sbr.rel (%p147) target = $region39
              $region36: #{pillar_feature_generator.1} parent=31 // loop_body
                %v153 = vld [vmem:[%s151] sm:%s144]
                %154 = vst [vmem:[%s152] sm:%s144] %v153
                %v155 = vld [vmem:[%s151 + $0x10] sm:%s144]
                %156 = vst [vmem:[%s152 + $0x8] sm:%s144] %v155
                %v157 = vld [vmem:[%s151 + $0x20] sm:%s144]
                %158 = vst [vmem:[%s152 + $0x10] sm:%s144] %v157
                %v159 = vld [vmem:[%s151 + $0x30] sm:%s144]
                %160 = vst [vmem:[%s152 + $0x18] sm:%s144] %v159
                %v161 = vld [vmem:[%s151 + $0x40] sm:%s144]
                %162 = vst [vmem:[%s152 + $0x20] sm:%s144] %v161
                %v163 = vld [vmem:[%s151 + $0x50] sm:%s144]
                %164 = vst [vmem:[%s152 + $0x28] sm:%s144] %v163
                %v165 = vld [vmem:[%s151 + $0x60] sm:%s144]
                %166 = vst [vmem:[%s152 + $0x30] sm:%s144] %v165
                %v167 = vld [vmem:[%s151 + $0x70] sm:%s144]
                %168 = vst [vmem:[%s152 + $0x38] sm:%s144] %v167
                %v169 = vld [vmem:[%s151 + $0x80] sm:%s144]
                %170 = vst [vmem:[%s152 + $0x40] sm:%s144] %v169
                %v171 = vld [vmem:[%s151 + $0x90] sm:%s144]
                %172 = vst [vmem:[%s152 + $0x48] sm:%s144] %v171
                %v173 = vld [vmem:[%s151 + $0xa0] sm:%s144]
                %174 = vst [vmem:[%s152 + $0x50] sm:%s144] %v173
                %v175 = vld [vmem:[%s151 + $0xb0] sm:%s144]
                %176 = vst [vmem:[%s152 + $0x58] sm:%s144] %v175
                %v177 = vld [vmem:[%s151 + $0xc0] sm:%s144]
                %178 = vst [vmem:[%s152 + $0x60] sm:%s144] %v177
                %v179 = vld [vmem:[%s151 + $0xd0] sm:%s144]
                %180 = vst [vmem:[%s152 + $0x68] sm:%s144] %v179
                %v181 = vld [vmem:[%s151 + $0xe0] sm:%s144]
                %182 = vst [vmem:[%s152 + $0x70] sm:%s144] %v181
                %v183 = vld [vmem:[%s151 + $0xf0] sm:%s144]
                %184 = vst [vmem:[%s152 + $0x78] sm:%s144] %v183
              $region37: #{pillar_feature_generator.1} parent=31 // loop_footer
                %s150 = sadd.s32 1, %s146
              $region38: #{pillar_feature_generator.1} parent=31 // loop_footer_branch
                %145 = sbr.rel target = $region34
              $region39: #{pillar_feature_generator.1} parent=31 // loop_exit
                _
            $region32: #{pillar_feature_generator.1} parent=23 // pred_fallthru
              _
          $region24: #{pillar_feature_generator.1} parent=19 // pred_fallthru
            _
          %229 = vnop
        $region20: #{pillar_feature_generator.1} parent=15 // pred_fallthru
          _
        // Predicated region
        $region55: #{pillar_feature_generator.1} parent=15 // pred_check
          %p230 = pneg %p73
        $region56: #{pillar_feature_generator.1} parent=15 // pred_check_branch
          %232 = sbr.rel (%p230) target = $region58
        $region57: #{pillar_feature_generator.1} parent=15 // pred_region
          %p233 = scmp.lt.s32.totalorder %s18, 1
          %s234 = scalar_select %p233, %s18, 1
          %p235 = scmp.lt.s32.totalorder %s19, 1
          %s236 = scalar_select %p235, %s19, 1
          %s237 = smul.addr %s234, 2
          %s238 = sadd.s32 %s236, %s237
          %s239 = smul.addr %s238, 8
          %s240 = scalar_lea.vmem %s1, %s239
        $region58: #{pillar_feature_generator.1} parent=15 // pred_fallthru
          _
      $region16: #{pillar_feature_generator.1} parent=5 // pred_fallthru
        _
      %p241 = scmp.le.s32.totalorder 1, %s11
      %p242 = scmp.lt.s32.totalorder %s11, 5
      %p243 = pnand %p241, %p242
      %p244 = pneg %p243
      // Predicated region
      $region59: #{pillar_feature_generator.1} parent=5 // pred_check
        _
      $region60: #{pillar_feature_generator.1} parent=5 // pred_check_branch
        %246 = sbr.rel (%p243) target = $region62
      $region61: #{pillar_feature_generator.1} parent=5 // pred_region
        %s247 = ssub.s32 %s11, 1
        %s248 = sand.u32 %s38, 1
        %s249 = sand.u32 %s38, 1
        %s250 = smul.addr %s249, 128
        %s251 = scalar_lea.vmem [#allocation2], %s250
        // Predicated region
        $region63: #{pillar_feature_generator.1} parent=61 // pred_check
          %p252 = pneg %p51
        $region64: #{pillar_feature_generator.1} parent=61 // pred_check_branch
          %254 = sbr.rel (%p252) target = $region66
        $region65: #{pillar_feature_generator.1} parent=61 // pred_region
          _
        $region66: #{pillar_feature_generator.1} parent=61 // pred_fallthru
          _
        %s255 = sand.u32 %s38, 1
        %s256 = sand.u32 %s38, 1
        %s257 = smul.addr %s256, 128
        %s258 = scalar_lea.vmem [#allocation2], %s257
        %p259 = pneg %p51
        %p260 = pneg %p48
        %p261 = scmp.lt.s32.totalorder %s20, 1
        %s262 = scalar_select %p261, %s20, 1
        %p263 = scmp.lt.s32.totalorder %s21, 1
        %s264 = scalar_select %p263, %s21, 1
        %s265 = smul.addr %s262, 2
        %s266 = sadd.s32 %s264, %s265
        %s267 = smul.addr %s266, 8
        %s268 = scalar_lea.vmem %s1, %s267
        %p269 = pneg %p79
        %p270 = pneg %p76
        %p271 = pneg %p107
        %p272 = pneg %p104
        %s273 = sand.u32 %s94, 1
        %s274 = scalar_lea.sflag [#allocation4], %s273
        %s275 = sand.u32 %s94, 1
        %s276 = smul.addr %s275, 288
        %s277 = scalar_lea.vmem [#allocation3], %s276
        %p278 = scmp.lt.s32.totalorder %s20, 1
        %s279 = scalar_select %p278, %s20, 1
        %p280 = scmp.lt.s32.totalorder %s21, 1
        %s281 = scalar_select %p280, %s21, 1
        %s282 = smul.addr %s279, 2
        %s283 = sadd.s32 %s281, %s282
        %s284 = smul.addr %s283, 8
        %s285 = scalar_lea.vmem %s1, %s284
        %v286 = vld [vmem:[%s251] sm:$0xff]
        %v287 = vld [vmem:[%s251 + $0x8] sm:$0xff]
        %v288 = vld [vmem:[%s251 + $0x10] sm:$0xff]
        %v289 = vld [vmem:[%s251 + $0x18] sm:$0xff]
        %s290 = scalar_lea.vmem %s251, 32 [#allocation2]
        %v291 = vld [vmem:[%s290] sm:$0xff]
        %v292 = vld [vmem:[%s290 + $0x8] sm:$0xff]
        %v293 = vld [vmem:[%s290 + $0x10] sm:$0xff]
        %v294 = vld [vmem:[%s290 + $0x18] sm:$0xff]
        %s295 = scalar_lea.vmem %s251, 64 [#allocation2]
        %v296 = vld [vmem:[%s295] sm:$0xff]
        %v297 = vld [vmem:[%s295 + $0x8] sm:$0xff]
        %v298 = vld [vmem:[%s295 + $0x10] sm:$0xff]
        %v299 = vld [vmem:[%s295 + $0x18] sm:$0xff]
        %s300 = scalar_lea.vmem %s251, 96 [#allocation2]
        %v301 = vld [vmem:[%s300] sm:$0xff]
        %v302 = vld [vmem:[%s300 + $0x8] sm:$0xff]
        %v303 = vld [vmem:[%s300 + $0x10] sm:$0xff]
        %v304 = vld [vmem:[%s300 + $0x18] sm:$0xff]
        %v305 = vld [vmem:[%s285] sm:$0x1]
        %v306 = vld [vmem:[%s285 + $0x1] sm:$0x1]
        %v307 = vld [vmem:[%s285 + $0x2] sm:$0x1]
        %v308 = vld [vmem:[%s285 + $0x3] sm:$0x1]
        %v309 = vld [vmem:[%s285 + $0x4] sm:$0x1]
        %v310 = vld [vmem:[%s285 + $0x5] sm:$0x1]
        %v311 = vlaneseq
        %v312 = vshrl.u32 %v311, 7
        %v313 = vadd.s32 %v312, 8
        %v314 = vadd.s32 %v312, 16
        %v315 = vadd.s32 %v312, 24
        %v316 = vcvt.s32.f32 %v312
        %v317 = vcvt.s32.f32 %v313
        %v318 = vcvt.s32.f32 %v314
        %v319 = vcvt.s32.f32 %v315
        %v320 = vperm.slane %v305, 0
        %vm321 = vcmp.lt.f32.partialorder %v316, %v320
        %vm322 = vcmp.lt.f32.partialorder %v317, %v320
        %vm323 = vcmp.lt.f32.partialorder %v318, %v320
        %vm324 = vcmp.lt.f32.partialorder %v319, %v320
        %325 = vst [vmem:[%s277] sm:$0xff] %v286
        %326 = vst [vmem:[%s277 + $0x8] sm:$0xff] %v287
        %327 = vst [vmem:[%s277 + $0x10] sm:$0xff] %v288
        %328 = vst [vmem:[%s277 + $0x18] sm:$0xff] %v289
        %s329 = scalar_lea.vmem %s277, 32 [#allocation3]
        %330 = vst [vmem:[%s329] sm:$0xff] %v291
        %331 = vst [vmem:[%s329 + $0x8] sm:$0xff] %v292
        %332 = vst [vmem:[%s329 + $0x10] sm:$0xff] %v293
        %333 = vst [vmem:[%s329 + $0x18] sm:$0xff] %v294
        %s334 = scalar_lea.vmem %s277, 64 [#allocation3]
        %335 = vst [vmem:[%s334] sm:$0xff] %v296
        %336 = vst [vmem:[%s334 + $0x8] sm:$0xff] %v297
        %337 = vst [vmem:[%s334 + $0x10] sm:$0xff] %v298
        %338 = vst [vmem:[%s334 + $0x18] sm:$0xff] %v299
        %s339 = scalar_lea.vmem %s277, 96 [#allocation3]
        %340 = vst [vmem:[%s339] sm:$0xff] %v301
        %341 = vst [vmem:[%s339 + $0x8] sm:$0xff] %v302
        %342 = vst [vmem:[%s339 + $0x10] sm:$0xff] %v303
        %343 = vst [vmem:[%s339 + $0x18] sm:$0xff] %v304
        %v344 = vperm.slane %v306, 0
        %v345 = vsub.f32 %v286, %v344
        %v346 = vsub.f32 %v287, %v344
        %v347 = vsub.f32 %v288, %v344
        %v348 = vsub.f32 %v289, %v344
        %v349 = vand.u32 2147483647, %v345
        %v350 = vand.u32 2147483647, %v346
        %v351 = vand.u32 2147483647, %v347
        %v352 = vand.u32 2147483647, %v348
        %v353 = vsel %vm321, %v349, 0.0
        %v354 = vsel %vm322, %v350, 0.0
        %v355 = vsel %vm323, %v351, 0.0
        %v356 = vsel %vm324, %v352, 0.0
        %s357 = scalar_lea.vmem %s277, 128 [#allocation3]
        %358 = vst [vmem:[%s357] sm:$0xff] %v353
        %359 = vst [vmem:[%s357 + $0x8] sm:$0xff] %v354
        %360 = vst [vmem:[%s357 + $0x10] sm:$0xff] %v355
        %361 = vst [vmem:[%s357 + $0x18] sm:$0xff] %v356
        %v362 = vperm.slane %v307, 0
        %v363 = vsub.f32 %v291, %v362
        %v364 = vsub.f32 %v292, %v362
        %v365 = vsub.f32 %v293, %v362
        %v366 = vsub.f32 %v294, %v362
        %v367 = vand.u32 2147483647, %v363
        %v368 = vand.u32 2147483647, %v364
        %v369 = vand.u32 2147483647, %v365
        %v370 = vand.u32 2147483647, %v366
        %v371 = vsel %vm321, %v367, 0.0
        %v372 = vsel %vm322, %v368, 0.0
        %v373 = vsel %vm323, %v369, 0.0
        %v374 = vsel %vm324, %v370, 0.0
        %s375 = scalar_lea.vmem %s277, 160 [#allocation3]
        %376 = vst [vmem:[%s375] sm:$0xff] %v371
        %377 = vst [vmem:[%s375 + $0x8] sm:$0xff] %v372
        %378 = vst [vmem:[%s375 + $0x10] sm:$0xff] %v373
        %379 = vst [vmem:[%s375 + $0x18] sm:$0xff] %v374
        %v380 = vperm.slane %v308, 0
        %v381 = vsub.f32 %v296, %v380
        %v382 = vsub.f32 %v297, %v380
        %v383 = vsub.f32 %v298, %v380
        %v384 = vsub.f32 %v299, %v380
        %v385 = vand.u32 2147483647, %v381
        %v386 = vand.u32 2147483647, %v382
        %v387 = vand.u32 2147483647, %v383
        %v388 = vand.u32 2147483647, %v384
        %v389 = vsel %vm321, %v385, 0.0
        %v390 = vsel %vm322, %v386, 0.0
        %v391 = vsel %vm323, %v387, 0.0
        %v392 = vsel %vm324, %v388, 0.0
        %s393 = scalar_lea.vmem %s277, 192 [#allocation3]
        %394 = vst [vmem:[%s393] sm:$0xff] %v389
        %395 = vst [vmem:[%s393 + $0x8] sm:$0xff] %v390
        %396 = vst [vmem:[%s393 + $0x10] sm:$0xff] %v391
        %397 = vst [vmem:[%s393 + $0x18] sm:$0xff] %v392
        %v398 = vperm.slane %v309, 0
        %v399 = vsub.f32 %v398, %v286
        %v400 = vsub.f32 %v398, %v287
        %v401 = vsub.f32 %v398, %v288
        %v402 = vsub.f32 %v398, %v289
        %v403 = vsel %vm321, %v399, 0.0
        %v404 = vsel %vm322, %v400, 0.0
        %v405 = vsel %vm323, %v401, 0.0
        %v406 = vsel %vm324, %v402, 0.0
        %s407 = scalar_lea.vmem %s277, 224 [#allocation3]
        %408 = vst [vmem:[%s407] sm:$0xff] %v403
        %409 = vst [vmem:[%s407 + $0x8] sm:$0xff] %v404
        %410 = vst [vmem:[%s407 + $0x10] sm:$0xff] %v405
        %411 = vst [vmem:[%s407 + $0x18] sm:$0xff] %v406
        %v412 = vperm.slane %v310, 0
        %v413 = vsub.f32 %v412, %v291
        %v414 = vsub.f32 %v412, %v292
        %v415 = vsub.f32 %v412, %v293
        %v416 = vsub.f32 %v412, %v294
        %v417 = vsel %vm321, %v413, 0.0
        %v418 = vsel %vm322, %v414, 0.0
        %v419 = vsel %vm323, %v415, 0.0
        %v420 = vsel %vm324, %v416, 0.0
        %s421 = scalar_lea.vmem %s277, 256 [#allocation3]
        %422 = vst [vmem:[%s421] sm:$0xff] %v417
        %423 = vst [vmem:[%s421 + $0x8] sm:$0xff] %v418
        %424 = vst [vmem:[%s421 + $0x10] sm:$0xff] %v419
        %425 = vst [vmem:[%s421 + $0x18] sm:$0xff] %v420
        %s426 = sand.u32 %s94, 1
        %s427 = scalar_lea.sflag [#allocation4], %s426
        %s428 = sand.u32 %s94, 1
        %s429 = smul.addr %s428, 288
        %s430 = scalar_lea.vmem [#allocation3], %s429
        // Predicated region
        $region67: #{pillar_feature_generator.1} parent=61 // pred_check
          %p431 = pneg %p104
        $region68: #{pillar_feature_generator.1} parent=61 // pred_check_branch
          %433 = sbr.rel (%p431) target = $region70
        $region69: #{pillar_feature_generator.1} parent=61 // pred_region
          %435 = vsyncadd %s427, 0
          %s436 = smul.addr %s20, 72
          %s437 = sadd.s32 %s21, %s436
          %s438 = smul.addr %s437, 8
          %s439 = scalar_lea.hbm %s2, %s438
          %s440 = sshll.u32 %s430, 4
          %s441 = int_to_ptr.vmem [resolvable:$true] %s440
          %s442 = sshll.u32 %s439, 4
          %s443 = int_to_ptr.hbm [resolvable:$true] %s442
          %448 = dma.vmem_to_hbm [thread:$0]  %s441, 4608, %s443, %s427, 128, 256, 8
        $region70: #{pillar_feature_generator.1} parent=61 // pred_fallthru
          _
      $region62: #{pillar_feature_generator.1} parent=5 // pred_fallthru
        _
      %p449 = scmp.le.s32.totalorder 2, %s11
      // Predicated region
      $region71: #{pillar_feature_generator.1} parent=5 // pred_check
        %p450 = pneg %p449
      $region72: #{pillar_feature_generator.1} parent=5 // pred_check_branch
        %452 = sbr.rel (%p450) target = $region74
      $region73: #{pillar_feature_generator.1} parent=5 // pred_region
        %s453 = ssub.s32 %s11, 2
        // Predicated region
        $region75: #{pillar_feature_generator.1} parent=73 // pred_check
          %p454 = pneg %p110
        $region76: #{pillar_feature_generator.1} parent=73 // pred_check_branch
          %456 = sbr.rel (%p454) target = $region78
        $region77: #{pillar_feature_generator.1} parent=73 // pred_region
          %s457 = sand.u32 %s95, 1
          %s458 = scalar_lea.sflag [#allocation4], %s457
          %s459 = sand.u32 %s95, 1
          %s460 = smul.addr %s459, 288
          %s461 = scalar_lea.vmem [#allocation3], %s460
          %463 = dma.done %s458, 4608
        $region78: #{pillar_feature_generator.1} parent=73 // pred_fallthru
          _
      $region74: #{pillar_feature_generator.1} parent=5 // pred_fallthru
        _
    $region6: #{pillar_feature_generator.1} parent=1 // loop_footer
      %s15 = sadd.s32 1, %s11
    $region7: #{pillar_feature_generator.1} parent=1 // loop_footer_branch
      %10 = sbr.rel target = $region3
    $region8: #{pillar_feature_generator.1} parent=1 // loop_exit
      _
    %464 = vsyncpa [#allocation4], 1
    %s465 = scalar_lea.sflag [#allocation4], 1
    %466 = vsyncpa %s465, 1

</llo_original>
